<compile_context>
chip_gen: v5e
topology: v5e:2x2
jax: 0.10.0
libtpu: 0.0.40
codegen_flags: <defaults>
</compile_context>

<pallas_src>
import functools

import jax
import jax.numpy as jnp
from jax.experimental import pallas as pl
from jax.experimental.pallas import tpu as pltpu


def selu_kernel(x_ref, o_ref, *, factor, alpha):
    # Load the (tile_rows, 128) block, compute in f32, store in the output dtype.
    x = x_ref[...].astype(jnp.float32)
    neg = alpha * (jnp.exp(x) - 1.0)          # exp -> EUP slot (cheap, off the VALU)
    o_ref[...] = (factor * jnp.where(x > 0, x, neg)).astype(o_ref.dtype)


def selu_pallas(x, factor=1.05070098, alpha=1.67326324, *, max_tile_rows=2048):
    """Elementwise SeLU on an arbitrarily-shaped array via a lane-dense 2D layout."""
    orig_shape = x.shape
    dtype = x.dtype

    flat = x.reshape(-1)
    n = flat.shape[0]

    LANES = 128                                   # full vreg lane width -> unmasked vst
    rows = pl.cdiv(n, LANES)
    # Biggest row tile up to max_tile_rows (1 MiB f32 block), multiple of 8 sublanes.
    tile_rows = min(max_tile_rows, max(8, pl.cdiv(rows, 8) * 8))
    padded_rows = pl.cdiv(rows, tile_rows) * tile_rows
    padded_n = padded_rows * LANES
    if padded_n != n:
        flat = jnp.pad(flat, (0, padded_n - n))   # zero-pad; SeLU(0) = 0, sliced off below
    x2 = flat.reshape(padded_rows, LANES)

    grid = (padded_rows // tile_rows,)

    out = pl.pallas_call(
        functools.partial(selu_kernel, factor=float(factor), alpha=float(alpha)),
        out_shape=jax.ShapeDtypeStruct((padded_rows, LANES), dtype),
        grid=grid,
        in_specs=[pl.BlockSpec((tile_rows, LANES), lambda i: (i, 0))],
        out_specs=pl.BlockSpec((tile_rows, LANES), lambda i: (i, 0)),
        compiler_params=pltpu.CompilerParams(
            dimension_semantics=("parallel",),     # shard grid steps across TCs (v7x)
            vmem_limit_bytes=64 * 1024 * 1024,     # headroom for double-buffered blocks
        ),
    )(x2)

    return out.reshape(-1)[:n].reshape(orig_shape)


def selu_ref(x, factor=1.05070098, alpha=1.67326324):
    return factor * jnp.where(x > 0, x, alpha * (jnp.exp(x) - 1.0))


if __name__ == "__main__":
    key = jax.random.PRNGKey(0)
    k1, k2 = jax.random.split(key, 2)

    # Small shape consistent with an activation module applied to a conv feature map.
    x = jax.random.normal(k1, (2, 4, 16, 16), jnp.float32) * 3.0

    out = selu_pallas(x)
    out = jax.block_until_ready(out)
    ref = selu_ref(x)
    assert out.shape == x.shape
    assert jnp.allclose(out, ref, atol=1e-5, rtol=1e-5), (
        f"max err = {jnp.max(jnp.abs(out - ref))}")

    # Second check: ragged size (not a multiple of 128) exercises the pad/slice path.
    y = jax.random.normal(k2, (3, 8, 37), jnp.float32) * 2.0
    out_y = jax.block_until_ready(selu_pallas(y))
    ref_y = selu_ref(y)
    assert out_y.shape == y.shape
    assert jnp.allclose(out_y, ref_y, atol=1e-5, rtol=1e-5), (
        f"max err = {jnp.max(jnp.abs(out_y - ref_y))}")

    print("KERNEL_OK")
</pallas_src>

<mosaic_0001>
module attributes {stable_mosaic.version = 11 : i64} {
  func.func @selu_kernel(%arg0: i32, %arg1: memref<16x128xf32, #tpu.memory_space<vmem>>, %arg2: memref<16x128xf32, #tpu.memory_space<vmem>>) attributes {dimension_semantics = [#tpu.dimension_semantics<parallel>], iteration_bounds = array<i64: 1>, scalar_prefetch = 0 : i64, scratch_operands = 0 : i64, tpu.core_type = #tpu.core_type<tc>, window_params = [{transform_indices = @transform_0, window_bounds = array<i64: 16, 128>}, {transform_indices = @transform_1, window_bounds = array<i64: 16, 128>}]} {
    %c0 = arith.constant 0 : index
    %c0_0 = arith.constant 0 : index
    %0 = vector.load %arg1[%c0, %c0_0] : memref<16x128xf32, #tpu.memory_space<vmem>>, vector<16x128xf32>
    %1 = math.exp %0 : vector<16x128xf32>
    %cst = arith.constant 1.000000e+00 : f32
    %2 = vector.broadcast %cst : f32 to vector<16x128xf32>
    %3 = arith.subf %1, %2 : vector<16x128xf32>
    %cst_1 = arith.constant 1.67326319 : f32
    %4 = vector.broadcast %cst_1 : f32 to vector<16x128xf32>
    %5 = arith.mulf %4, %3 : vector<16x128xf32>
    %cst_2 = arith.constant 0.000000e+00 : f32
    %6 = vector.broadcast %cst_2 : f32 to vector<16x128xf32>
    %7 = arith.cmpf ogt, %0, %6 : vector<16x128xf32>
    %8 = arith.select %7, %0, %5 : vector<16x128xi1>, vector<16x128xf32>
    %cst_3 = arith.constant 1.05070102 : f32
    %9 = vector.broadcast %cst_3 : f32 to vector<16x128xf32>
    %10 = arith.mulf %9, %8 : vector<16x128xf32>
    %c0_4 = arith.constant 0 : index
    %c0_5 = arith.constant 0 : index
    %11 = vector.load %arg2[%c0_4, %c0_5] : memref<16x128xf32, #tpu.memory_space<vmem>>, vector<16x128xf32>
    tpu.vector_store %arg2[%c0_4, %c0_5], %10 {strides = array<i32>} : memref<16x128xf32, #tpu.memory_space<vmem>>, vector<16x128xf32>,
    return
  }
  func.func @transform_0(%arg0: i32) -> (i32, i32) {
    %c0_i32 = arith.constant 0 : i32
    %c0_i32_0 = arith.constant 0 : i32
    return %arg0, %c0_i32 : i32, i32
  }
  func.func @transform_1(%arg0: i32) -> (i32, i32) {
    %c0_i32 = arith.constant 0 : i32
    %c0_i32_0 = arith.constant 0 : i32
    return %arg0, %c0_i32 : i32, i32
  }
}

</mosaic_0001>

<llo_original>
// kernel: tpu_custom_call.1
$region0: #{tpu_custom_call.1}
  #allocation0 [shape = 'u32[]', space=smem, size = 0x4, offset = 0x4, fixed_abs, tag = 'smem constant byte address 0x4 - core index']
  #allocation1 [shape = 'u32[72,128]{1,0:T(1,128)}', space=vmem, size = 0x9000, scoped, tag = 'internal scratch']
  %s0 = inlined_call_operand.hbm [shape: f32[16,128], index: 0, kind: input, shape index: {}]
  %s1 = inlined_call_operand.hbm [shape: f32[16,128], index: 1, kind: output, shape index: {}]
  %s2 = sld [smem:[#allocation0]]
  $region18: #{tpu_custom_call.1} parent=0
    _
  %s4 = ssub.s32 1, %s2
  %s5 = scalar_select 0, %s4, %s2
  $region1: #{tpu_custom_call.1} parent=0
    #allocation2 [shape = 'u8[8192]{0}', space=vmem, size = 0x2000, scoped, tag = 'input window, operand 0, single buffered']
    #allocation3 [shape = 's32[1]{0}', space=sflag, size = 0x4, scoped, tag = 'scoped memory for tpu_custom_call.1']
    #allocation4 [shape = 's32[1]{0}', space=sflag, size = 0x4, scoped, tag = 'scoped memory for tpu_custom_call.1']
    #allocation5 [shape = 'u8[8192]{0}', space=vmem, size = 0x2000, scoped, tag = 'output window, operand 0, single buffered']
    %6 = vsyncpa [#allocation3], 0
    %7 = vsyncpa [#allocation4], 0
    // Predicated region
    $region2: #{tpu_custom_call.1} parent=1 // pred_check
      _
    $region3: #{tpu_custom_call.1} parent=1 // pred_check_branch
      %9 = sbr.rel (0) target = $region5
    $region4: #{tpu_custom_call.1} parent=1 // pred_region
      %11 = vsyncadd [#allocation3], 0
      %s12 = sshll.u32 %s0, 4
      %s13 = int_to_ptr.hbm [resolvable:$true] %s12
      %s14 = sshll.u32 [#allocation2], 4
      %s15 = int_to_ptr.vmem [resolvable:$true] %s14
      %20 = dma.hbm_to_vmem [thread:$0]  %s13, 256, %s15, [#allocation3], 128, 128, 8
    $region5: #{tpu_custom_call.1} parent=1 // pred_fallthru
      _
    // Predicated region
    $region6: #{tpu_custom_call.1} parent=1 // pred_check
      _
    $region7: #{tpu_custom_call.1} parent=1 // pred_check_branch
      %22 = sbr.rel (0) target = $region9
    $region8: #{tpu_custom_call.1} parent=1 // pred_region
      %24 = dma.done [#allocation3], 256
    $region9: #{tpu_custom_call.1} parent=1 // pred_fallthru
      _
    %v25 = vld [vmem:[#allocation2] sm:$0xff]
    %v26 = vld [vmem:[#allocation2 + $0x8] sm:$0xff]
    %v27 = vmul.f32 %v25, 1.442695
    %v28 = vpow.pop %v27
    %v29 = vmul.f32 %v26, 1.442695
    %v30 = vpow.pop %v29
    %v31 = vsub.f32 %v28, 1.0
    %v32 = vsub.f32 %v30, 1.0
    %v33 = vmul.f32 %v31, 1.6732632
    %v34 = vmul.f32 %v32, 1.6732632
    %vm35 = vcmp.gt.f32.partialorder %v25, 0.0
    %vm36 = vcmp.gt.f32.partialorder %v26, 0.0
    %v37 = vsel %vm35, %v25, %v33
    %v38 = vsel %vm36, %v26, %v34
    %v39 = vmul.f32 %v37, 1.050701
    %v40 = vmul.f32 %v38, 1.050701
    %41 = vst [vmem:[#allocation5] sm:$0xff] %v39
    %42 = vst [vmem:[#allocation5 + $0x8] sm:$0xff] %v40
    // Predicated region
    $region10: #{tpu_custom_call.1} parent=1 // pred_check
      _
    $region11: #{tpu_custom_call.1} parent=1 // pred_check_branch
      %44 = sbr.rel (0) target = $region13
    $region12: #{tpu_custom_call.1} parent=1 // pred_region
      %46 = vsyncadd [#allocation4], 0
      %s47 = sshll.u32 [#allocation5], 4
      %s48 = int_to_ptr.vmem [resolvable:$true] %s47
      %s49 = sshll.u32 %s1, 4
      %s50 = int_to_ptr.hbm [resolvable:$true] %s49
      %55 = dma.vmem_to_hbm [thread:$0]  %s48, 256, %s50, [#allocation4], 128, 128, 8
    $region13: #{tpu_custom_call.1} parent=1 // pred_fallthru
      _
    // Predicated region
    $region14: #{tpu_custom_call.1} parent=1 // pred_check
      _
    $region15: #{tpu_custom_call.1} parent=1 // pred_check_branch
      %57 = sbr.rel (0) target = $region17
    $region16: #{tpu_custom_call.1} parent=1 // pred_region
      %59 = dma.done [#allocation4], 256
    $region17: #{tpu_custom_call.1} parent=1 // pred_fallthru
      _
    %60 = vsyncpa [#allocation3], 1
    %61 = vsyncpa [#allocation4], 1

</llo_original>
